<compile_context>
chip_gen: v5e
topology: v5e:2x2
jax: 0.10.0
libtpu: 0.0.40
codegen_flags: <defaults>
</compile_context>

<pallas_src>
import jax
import jax.numpy as jnp
from jax.experimental import pallas as pl
from jax.experimental.pallas import tpu as pltpu

KSIZE = 3
DILATION = 2
PAD = 2
EPS = 1e-5


def _conv_stats_kernel(x_ref, w_ref, conv_ref, stats_ref):
    """Dilated conv as ONE K=3*W*Cin matmul + per-batch BN partial stats.

    x_ref    : (Hp, W*Cin)           H-padded image of one batch element
    w_ref    : (KSIZE*W*Cin, W*Cout) block-Toeplitz weights (W pad implicit,
                                     kh taps stacked along K)
    conv_ref : (H, W*Cout)           conv output rows (lane-dense)
    stats_ref: (2, W*Cout)           [sum, sum-of-squares] over the H rows
    """
    h = conv_ref.shape[0]
    # Stack the 3 dilated row windows along lanes -> (H, 3*W*Cin) LHS,
    # single MXU push, f32 accumulate in the matmul result path.
    lhs = jnp.concatenate(
        [x_ref[pl.ds(kh * DILATION, h), :] for kh in range(KSIZE)], axis=1)
    conv = jnp.dot(lhs, w_ref[...], preferred_element_type=jnp.float32)

    conv_ref[...] = conv.astype(conv_ref.dtype)
    stats_ref[0:1, :] = jnp.sum(conv, axis=0, keepdims=True)
    stats_ref[1:2, :] = jnp.sum(conv * conv, axis=0, keepdims=True)


def _toeplitz_weights(weight, W):
    """(Cout, Cin, 3, 3) -> (KSIZE*W*Cin, W*Cout); zero-pads W implicitly.

    For repeated forwards with static weights, hoist this out of the
    per-call path (it is pure weight preprocessing).
    """
    Cout, Cin = weight.shape[0], weight.shape[1]
    # T[kw, w_in, w_out] = 1 iff w_in == w_out + DILATION*kw - PAD, 0 <= w_in < W
    taps = jnp.stack(
        [jnp.eye(W, W, k=PAD - DILATION * kw, dtype=jnp.float32)
         for kw in range(KSIZE)], axis=0)                          # (KSIZE, W, W)
    # wt[kh, w_in, ci, w_out, co] = sum_kw T[kw, w_in, w_out] * weight[co, ci, kh, kw]
    wt = jnp.einsum("kpq,oihk->hpiqo", taps, weight.astype(jnp.float32))
    return wt.reshape(KSIZE * W * Cin, W * Cout)


@jax.jit
def dilconv_op(x_nchw, weight, bias, gamma, beta):
    """Forward of DilConvOp.  x_nchw: (N, Cin, H, W), weight: (Cout, Cin, 3, 3).

    `bias` is accepted for API parity but not added inside the kernel: under
    training-mode BatchNorm a per-channel constant is cancelled exactly by the
    batch-mean subtraction, so it has no effect on the output.
    """
    del bias
    N, Cin, H, W = x_nchw.shape
    Cout = weight.shape[0]
    WCin, WCout = W * Cin, W * Cout
    f32 = jnp.float32
    Hp = H + 2 * PAD

    # NCHW -> (N, H, W*Cin); pad only the 2+2 halo rows (W pad lives in wt).
    x = jnp.transpose(x_nchw, (0, 2, 3, 1)).reshape(N, H, WCin)
    xpad = jnp.pad(x.astype(f32), ((0, 0), (PAD, PAD), (0, 0)))

    wt = _toeplitz_weights(weight, W)                     # (3*WCin, WCout)

    conv_bytes = N * H * WCout * 4
    cost1 = pl.CostEstimate(
        flops=2 * N * H * (KSIZE * WCin) * WCout,         # actual MXU flops
        transcendentals=0,
        bytes_accessed=xpad.size * 4 + wt.size * 4 + conv_bytes + N * 2 * WCout * 4)

    # ---- Pass 1 (only pallas_call): dilated conv + partial BN statistics ----
    conv_out, stats = pl.pallas_call(
        _conv_stats_kernel,
        grid=(N,),
        in_specs=[
            pl.BlockSpec((None, Hp, WCin), lambda n: (n, 0, 0)),
            pl.BlockSpec((KSIZE * WCin, WCout), lambda n: (0, 0)),
        ],
        out_specs=[
            pl.BlockSpec((None, H, WCout), lambda n: (n, 0, 0)),
            pl.BlockSpec((None, 2, WCout), lambda n: (n, 0, 0)),
        ],
        out_shape=[
            jax.ShapeDtypeStruct((N, H, WCout), f32),
            jax.ShapeDtypeStruct((N, 2, WCout), f32),
        ],
        compiler_params=pltpu.CompilerParams(
            dimension_semantics=("parallel",),
            vmem_limit_bytes=32 * 1024 * 1024),
        cost_estimate=cost1,
    )(xpad, wt)

    # ---- Finalize global BN statistics (tiny O(Cout) reduction) -------------
    st = stats.reshape(N, 2, W, Cout)
    count = N * H * W
    mean = jnp.sum(st[:, 0], axis=(0, 1)) / count
    var = jnp.maximum(jnp.sum(st[:, 1], axis=(0, 1)) / count - mean * mean, 0.0)
    scale = gamma.astype(f32) * jax.lax.rsqrt(var + EPS)
    shift = beta.astype(f32) - mean * scale

    # ---- Normalize, fused by XLA with the reshape/transpose back to NCHW ----
    y = conv_out.reshape(N, H, W, Cout) * scale + shift
    return jnp.transpose(y, (0, 3, 1, 2))


def _reference(x_nchw, weight, bias, gamma, beta):
    """Pure-JAX reference (conv_general_dilated + training-mode BN)."""
    conv = jax.lax.conv_general_dilated(
        x_nchw, weight,
        window_strides=(1, 1),
        padding=[(PAD, PAD), (PAD, PAD)],
        rhs_dilation=(DILATION, DILATION),
        dimension_numbers=("NCHW", "OIHW", "NCHW"),
    ) + bias[None, :, None, None]
    mean = jnp.mean(conv, axis=(0, 2, 3), keepdims=True)
    var = jnp.mean((conv - mean) ** 2, axis=(0, 2, 3), keepdims=True)
    return ((conv - mean) * jax.lax.rsqrt(var + EPS)
            * gamma[None, :, None, None] + beta[None, :, None, None])


if __name__ == "__main__":
    N, Cin, Cout, H, W = 2, 4, 8, 16, 16

    key = jax.random.PRNGKey(0)
    kx, kw, kb = jax.random.split(key, 3)
    x = jax.random.normal(kx, (N, Cin, H, W), dtype=jnp.float32)
    weight = 0.1 * jax.random.normal(kw, (Cout, Cin, KSIZE, KSIZE), jnp.float32)
    bias = 0.05 * jax.random.normal(kb, (Cout,), jnp.float32)
    gamma = jnp.ones((Cout,), jnp.float32)   # BatchNorm2d default init
    beta = jnp.zeros((Cout,), jnp.float32)

    out = jax.block_until_ready(dilconv_op(x, weight, bias, gamma, beta))

    ref = _reference(x, weight, bias, gamma, beta)
    assert out.shape == (N, Cout, H, W), out.shape
    assert jnp.allclose(out, ref, rtol=1e-3, atol=1e-3), float(
        jnp.max(jnp.abs(out - ref)))

    print("KERNEL_OK")
</pallas_src>

<mosaic_0001>
module attributes {stable_mosaic.version = 11 : i64} {
  func.func @_conv_stats_kernel(%arg0: i32, %arg1: memref<1x20x64xf32, #tpu.memory_space<vmem>>, %arg2: memref<192x128xf32, #tpu.memory_space<vmem>>, %arg3: memref<1x16x128xf32, #tpu.memory_space<vmem>>, %arg4: memref<1x2x128xf32, #tpu.memory_space<vmem>>) attributes {dimension_semantics = [#tpu.dimension_semantics<parallel>], iteration_bounds = array<i64: 2>, scalar_prefetch = 0 : i64, scratch_operands = 0 : i64, tpu.core_type = #tpu.core_type<tc>, window_params = [{transform_indices = @transform_0, window_bounds = array<i64: 1, 20, 64>}, {pipeline_mode = #tpu.pipeline_mode<synchronous>, transform_indices = @transform_1, window_bounds = array<i64: 192, 128>}, {transform_indices = @transform_2, window_bounds = array<i64: 1, 16, 128>}, {transform_indices = @transform_3, window_bounds = array<i64: 1, 2, 128>}]} {
    %c0 = arith.constant 0 : index
    %c0_0 = arith.constant 0 : index
    %c0_1 = arith.constant 0 : index
    %0 = vector.load %arg1[%c0, %c0_0, %c0_1] : memref<1x20x64xf32, #tpu.memory_space<vmem>>, vector<1x16x64xf32>
    %1 = vector.shape_cast %0 : vector<1x16x64xf32> to vector<16x64xf32>
    %c0_2 = arith.constant 0 : index
    %c2 = arith.constant 2 : index
    %c0_3 = arith.constant 0 : index
    %2 = vector.load %arg1[%c0_2, %c2, %c0_3] : memref<1x20x64xf32, #tpu.memory_space<vmem>>, vector<1x16x64xf32>
    %3 = vector.shape_cast %2 : vector<1x16x64xf32> to vector<16x64xf32>
    %c0_4 = arith.constant 0 : index
    %c4 = arith.constant 4 : index
    %c0_5 = arith.constant 0 : index
    %4 = vector.load %arg1[%c0_4, %c4, %c0_5] : memref<1x20x64xf32, #tpu.memory_space<vmem>>, vector<1x16x64xf32>
    %5 = vector.shape_cast %4 : vector<1x16x64xf32> to vector<16x64xf32>
    %6 = tpu.concatenate %1, %3, %5 in 1 : vector<16x64xf32>, vector<16x64xf32>, vector<16x64xf32> -> vector<16x192xf32>
    %c0_6 = arith.constant 0 : index
    %c0_7 = arith.constant 0 : index
    %7 = vector.load %arg2[%c0_6, %c0_7] : memref<192x128xf32, #tpu.memory_space<vmem>>, vector<192x128xf32>
    %cst = arith.constant dense<0.000000e+00> : vector<16x128xf32>
    %8 = tpu.matmul %6, %7, %cst {dimension_numbers = #tpu.dot_dimension_numbers<[1], [0], [0], [1], [0, 0, 1, 1], [], []>} : vector<16x192xf32>, vector<192x128xf32>, vector<16x128xf32> -> vector<16x128xf32>
    %c0_8 = arith.constant 0 : index
    %c0_9 = arith.constant 0 : index
    %c0_10 = arith.constant 0 : index
    %9 = vector.load %arg3[%c0_8, %c0_9, %c0_10] : memref<1x16x128xf32, #tpu.memory_space<vmem>>, vector<1x16x128xf32>
    %10 = vector.shape_cast %9 : vector<1x16x128xf32> to vector<16x128xf32>
    %11 = vector.shape_cast %8 : vector<16x128xf32> to vector<1x16x128xf32>
    tpu.vector_store %arg3[%c0_8, %c0_9, %c0_10], %11 {strides = array<i32>} : memref<1x16x128xf32, #tpu.memory_space<vmem>>, vector<1x16x128xf32>,
    %cst_11 = arith.constant dense<0.000000e+00> : vector<128xf32>
    %12 = vector.multi_reduction <add>, %8, %cst_11 [0] : vector<16x128xf32> to vector<128xf32>
    %13 = vector.shape_cast %12 : vector<128xf32> to vector<1x128xf32>
    %c0_12 = arith.constant 0 : index
    %c0_13 = arith.constant 0 : index
    %c0_14 = arith.constant 0 : index
    %14 = vector.load %arg4[%c0_12, %c0_13, %c0_14] : memref<1x2x128xf32, #tpu.memory_space<vmem>>, vector<1x1x128xf32>
    %15 = vector.shape_cast %14 : vector<1x1x128xf32> to vector<1x128xf32>
    %16 = vector.shape_cast %13 : vector<1x128xf32> to vector<1x1x128xf32>
    tpu.vector_store %arg4[%c0_12, %c0_13, %c0_14], %16 {strides = array<i32>} : memref<1x2x128xf32, #tpu.memory_space<vmem>>, vector<1x1x128xf32>,
    %17 = arith.mulf %8, %8 : vector<16x128xf32>
    %cst_15 = arith.constant dense<0.000000e+00> : vector<128xf32>
    %18 = vector.multi_reduction <add>, %17, %cst_15 [0] : vector<16x128xf32> to vector<128xf32>
    %19 = vector.shape_cast %18 : vector<128xf32> to vector<1x128xf32>
    %c0_16 = arith.constant 0 : index
    %c1 = arith.constant 1 : index
    %c0_17 = arith.constant 0 : index
    %20 = vector.load %arg4[%c0_16, %c1, %c0_17] : memref<1x2x128xf32, #tpu.memory_space<vmem>>, vector<1x1x128xf32>
    %21 = vector.shape_cast %20 : vector<1x1x128xf32> to vector<1x128xf32>
    %22 = vector.shape_cast %19 : vector<1x128xf32> to vector<1x1x128xf32>
    tpu.vector_store %arg4[%c0_16, %c1, %c0_17], %22 {strides = array<i32>} : memref<1x2x128xf32, #tpu.memory_space<vmem>>, vector<1x1x128xf32>,
    return
  }
  func.func @transform_0(%arg0: i32) -> (i32, i32, i32) {
    %c0_i32 = arith.constant 0 : i32
    %c0_i32_0 = arith.constant 0 : i32
    %c0_i32_1 = arith.constant 0 : i32
    return %arg0, %c0_i32, %c0_i32_0 : i32, i32, i32
  }
  func.func @transform_1(%arg0: i32) -> (i32, i32) {
    %c0_i32 = arith.constant 0 : i32
    %c0_i32_0 = arith.constant 0 : i32
    %c0_i32_1 = arith.constant 0 : i32
    return %c0_i32, %c0_i32_0 : i32, i32
  }
  func.func @transform_2(%arg0: i32) -> (i32, i32, i32) {
    %c0_i32 = arith.constant 0 : i32
    %c0_i32_0 = arith.constant 0 : i32
    %c0_i32_1 = arith.constant 0 : i32
    return %arg0, %c0_i32, %c0_i32_0 : i32, i32, i32
  }
  func.func @transform_3(%arg0: i32) -> (i32, i32, i32) {
    %c0_i32 = arith.constant 0 : i32
    %c0_i32_0 = arith.constant 0 : i32
    %c0_i32_1 = arith.constant 0 : i32
    return %arg0, %c0_i32, %c0_i32_0 : i32, i32, i32
  }
}

</mosaic_0001>

<llo_original>
// kernel: dilconv_op.1
$region0: #{dilconv_op.1}
  #allocation0 [shape = 'u32[]', space=smem, size = 0x4, offset = 0x4, fixed_abs, tag = 'smem constant byte address 0x4 - core index']
  #allocation1 [shape = 'u32[72,128]{1,0:T(1,128)}', space=vmem, size = 0x9000, scoped, tag = 'internal scratch']
  %s0 = inlined_call_operand.vmem [shape: f32[2,20,64], index: 0, kind: input, shape index: {}]
  %s1 = inlined_call_operand.vmem [shape: f32[192,128], index: 1, kind: input, shape index: {}]
  %s2 = inlined_call_operand.vmem [shape: f32[2,16,128], index: 2, kind: output, shape index: {0}]
  %s3 = inlined_call_operand.vmem [shape: f32[2,2,128], index: 3, kind: output, shape index: {1}]
  %4 = xla_tuple %s2, %s3
  %s5 = sld [smem:[#allocation0]]
  $region49: #{dilconv_op.1} parent=0
    _
  %s7 = ssub.s32 1, %s5
  %s8 = scalar_select 0, %s7, %s5
  loop: start=0, step=1, limit=4
  $region2: #{dilconv_op.1} parent=0 // loop_pre_header
    _
  $region3: #{dilconv_op.1} parent=0 // loop_header
    %s10 = sphi 0, %s14
    %p11 = scmp.ge.s32.totalorder %s10, 4
    %s20 = sphi 0, %s22
    %s23 = sphi 0, %s20
    %s24 = sphi 0, %s23
    %s40 = sphi 0, %s24
    %s44 = sphi 0, %s44
    %s46 = sphi 0, %s44
    %s47 = sphi 0, %s46
    %s61 = sphi 0, %s47
    %s67 = sphi 0, %s69
    %s70 = sphi 0, %s67
    %s71 = sphi 0, %s70
    %s87 = sphi 0, %s71
    %s93 = sphi 0, %s95
    %s96 = sphi 0, %s93
    %s97 = sphi 0, %s96
    %s113 = sphi 0, %s97
  $region4: #{dilconv_op.1} parent=0 // loop_header_branch
    %13 = sbr.rel (%p11) target = $region8
  $region5: #{dilconv_op.1} parent=0 // loop_body
    %s15 = ssub.s32 %s10, 1
    %s16 = ssub.s32 %s10, 2
    %s17 = sadd.s32 %s10, 1
    %s18 = ssub.s32 %s10, %s17
    %p19 = scmp.eq.s32.totalorder %s18, 0
    %s21 = sadd.s32 %s20, 1
    %s22 = scalar_select %p19, %s20, %s21
    %p25 = pneg %p19
    %p26 = scmp.eq.s32.totalorder %s10, 1
    %p27 = por %p25, %p26
    %p28 = scmp.ne.s32.totalorder %s20, %s23
    %p29 = scmp.eq.s32.totalorder %s10, 0
    %p30 = por %p28, %p29
    %p31 = scmp.ne.s32.totalorder %s20, %s23
    %p32 = scmp.eq.s32.totalorder %s15, 1
    %p33 = por %p31, %p32
    %p34 = scmp.ne.s32.totalorder %s23, %s24
    %p35 = scmp.eq.s32.totalorder %s15, 0
    %p36 = por %p34, %p35
    %p37 = scmp.ne.s32.totalorder %s23, %s24
    %p38 = scmp.eq.s32.totalorder %s16, 1
    %p39 = por %p37, %p38
    %p41 = scmp.ne.s32.totalorder %s24, %s40
    %p42 = scmp.eq.s32.totalorder %s16, 0
    %p43 = por %p41, %p42
    %s45 = sadd.s32 %s44, 1
    %p48 = scmp.eq.s32.totalorder %s10, 1
    %p49 = scmp.ne.s32.totalorder %s44, %s46
    %p50 = scmp.eq.s32.totalorder %s10, 0
    %p51 = por %p49, %p50
    %p52 = scmp.ne.s32.totalorder %s44, %s46
    %p53 = scmp.eq.s32.totalorder %s15, 1
    %p54 = por %p52, %p53
    %p55 = scmp.ne.s32.totalorder %s46, %s47
    %p56 = scmp.eq.s32.totalorder %s15, 0
    %p57 = por %p55, %p56
    %p58 = scmp.ne.s32.totalorder %s46, %s47
    %p59 = scmp.eq.s32.totalorder %s16, 1
    %p60 = por %p58, %p59
    %p62 = scmp.ne.s32.totalorder %s47, %s61
    %p63 = scmp.eq.s32.totalorder %s16, 0
    %p64 = por %p62, %p63
    %s65 = ssub.s32 %s10, %s17
    %p66 = scmp.eq.s32.totalorder %s65, 0
    %s68 = sadd.s32 %s67, 1
    %s69 = scalar_select %p66, %s67, %s68
    %p72 = pneg %p66
    %p73 = scmp.eq.s32.totalorder %s10, 1
    %p74 = por %p72, %p73
    %p75 = scmp.ne.s32.totalorder %s67, %s70
    %p76 = scmp.eq.s32.totalorder %s10, 0
    %p77 = por %p75, %p76
    %p78 = scmp.ne.s32.totalorder %s67, %s70
    %p79 = scmp.eq.s32.totalorder %s15, 1
    %p80 = por %p78, %p79
    %p81 = scmp.ne.s32.totalorder %s70, %s71
    %p82 = scmp.eq.s32.totalorder %s15, 0
    %p83 = por %p81, %p82
    %p84 = scmp.ne.s32.totalorder %s70, %s71
    %p85 = scmp.eq.s32.totalorder %s16, 1
    %p86 = por %p84, %p85
    %p88 = scmp.ne.s32.totalorder %s71, %s87
    %p89 = scmp.eq.s32.totalorder %s16, 0
    %p90 = por %p88, %p89
    %s91 = ssub.s32 %s10, %s17
    %p92 = scmp.eq.s32.totalorder %s91, 0
    %s94 = sadd.s32 %s93, 1
    %s95 = scalar_select %p92, %s93, %s94
    %p98 = pneg %p92
    %p99 = scmp.eq.s32.totalorder %s10, 1
    %p100 = por %p98, %p99
    %p101 = scmp.ne.s32.totalorder %s93, %s96
    %p102 = scmp.eq.s32.totalorder %s10, 0
    %p103 = por %p101, %p102
    %p104 = scmp.ne.s32.totalorder %s93, %s96
    %p105 = scmp.eq.s32.totalorder %s15, 1
    %p106 = por %p104, %p105
    %p107 = scmp.ne.s32.totalorder %s96, %s97
    %p108 = scmp.eq.s32.totalorder %s15, 0
    %p109 = por %p107, %p108
    %p110 = scmp.ne.s32.totalorder %s96, %s97
    %p111 = scmp.eq.s32.totalorder %s16, 1
    %p112 = por %p110, %p111
    %p114 = scmp.ne.s32.totalorder %s97, %s113
    %p115 = scmp.eq.s32.totalorder %s16, 0
    %p116 = por %p114, %p115
    %p117 = scmp.le.s32.totalorder 1, %s10
    %p118 = scmp.lt.s32.totalorder %s10, 3
    %p119 = pnand %p117, %p118
    %p120 = pneg %p119
    // Predicated region
    $region9: #{dilconv_op.1} parent=5 // pred_check
      _
    $region10: #{dilconv_op.1} parent=5 // pred_check_branch
      %122 = sbr.rel (%p119) target = $region12
    $region11: #{dilconv_op.1} parent=5 // pred_region
      %s123 = ssub.s32 %s10, 1
      // Predicated region
      $region13: #{dilconv_op.1} parent=11 // pred_check
        %p124 = pneg %p57
      $region14: #{dilconv_op.1} parent=11 // pred_check_branch
        %126 = sbr.rel (%p124) target = $region16
      $region15: #{dilconv_op.1} parent=11 // pred_region
        _
      $region16: #{dilconv_op.1} parent=11 // pred_fallthru
        _
    $region12: #{dilconv_op.1} parent=5 // pred_fallthru
      _
    %p127 = scmp.lt.s32.totalorder %s10, 2
    // Predicated region
    $region17: #{dilconv_op.1} parent=5 // pred_check
      %p128 = pneg %p127
    $region18: #{dilconv_op.1} parent=5 // pred_check_branch
      %130 = sbr.rel (%p128) target = $region20
    $region19: #{dilconv_op.1} parent=5 // pred_region
      // Predicated region
      $region21: #{dilconv_op.1} parent=19 // pred_check
        %p131 = pneg %p30
      $region22: #{dilconv_op.1} parent=19 // pred_check_branch
        %133 = sbr.rel (%p131) target = $region24
      $region23: #{dilconv_op.1} parent=19 // pred_region
        %p134 = scmp.lt.s32.totalorder %s10, 1
        %s135 = scalar_select %p134, %s10, 1
        %s136 = smul.addr %s135, 3
        %s137 = smul.addr %s136, 8
        %s138 = scalar_lea.vmem %s0, %s137
      $region24: #{dilconv_op.1} parent=19 // pred_fallthru
        _
    $region20: #{dilconv_op.1} parent=5 // pred_fallthru
      _
    %p139 = scmp.le.s32.totalorder 1, %s10
    %p140 = scmp.lt.s32.totalorder %s10, 3
    %p141 = pnand %p139, %p140
    %p142 = pneg %p141
    // Predicated region
    $region25: #{dilconv_op.1} parent=5 // pred_check
      _
    $region26: #{dilconv_op.1} parent=5 // pred_check_branch
      %144 = sbr.rel (%p141) target = $region28
    $region27: #{dilconv_op.1} parent=5 // pred_region
      %s145 = ssub.s32 %s10, 1
      %p146 = scmp.lt.s32.totalorder %s15, 1
      %s147 = scalar_select %p146, %s15, 1
      %s148 = smul.addr %s147, 3
      %s149 = smul.addr %s148, 8
      %s150 = scalar_lea.vmem %s0, %s149
      %p151 = pneg %p36
      %p152 = pneg %p33
      %p153 = pneg %p57
      %p154 = pneg %p54
      %p155 = pneg %p83
      %p156 = pneg %p80
      %p157 = scmp.lt.s32.totalorder %s15, 1
      %s158 = scalar_select %p157, %s15, 1
      %s159 = smul.addr %s158, 2
      %s160 = smul.addr %s159, 8
      %s161 = scalar_lea.vmem %s2, %s160
      %p162 = pneg %p109
      %p163 = pneg %p106
      %p164 = scmp.lt.s32.totalorder %s15, 1
      %s165 = scalar_select %p164, %s15, 1
      %s166 = smul.addr %s165, 2
      %s167 = scalar_lea.vmem %s3, %s166
      %p168 = scmp.lt.s32.totalorder %s15, 1
      %s169 = scalar_select %p168, %s15, 1
      %s170 = smul.addr %s169, 3
      %s171 = smul.addr %s170, 8
      %s172 = scalar_lea.vmem %s0, %s171
      %p173 = scmp.lt.s32.totalorder %s15, 1
      %s174 = scalar_select %p173, %s15, 1
      %s175 = smul.addr %s174, 2
      %s176 = smul.addr %s175, 8
      %s177 = scalar_lea.vmem %s2, %s176
      %p178 = scmp.lt.s32.totalorder %s15, 1
      %s179 = scalar_select %p178, %s15, 1
      %s180 = smul.addr %s179, 2
      %s181 = scalar_lea.vmem %s3, %s180
      %v182 = vld [vmem:[%s172] sm:$0xff]
      %v183 = vld [vmem:[%s172 + $0x8] sm:$0xff]
      %v184 = vld [vmem:[%s172 + $0x2] sm:$0xff]
      %v185 = vld [vmem:[%s172 + $0xa] sm:$0xff]
      %v186 = vld [vmem:[%s172 + $0x4] sm:$0xff]
      %v187 = vld [vmem:[%s172 + $0xc] sm:$0xff]
      %190 = vrot.lane.b32.xlu0 %v184, 64
      %v191 = vpop.permute.xlu0 %190
      %192 = vrot.lane.b32.xlu0 %v185, 64
      %v193 = vpop.permute.xlu0 %192
      %vm196 = vcmask 523264
      %v197 = vsel %vm196, %v182, %v191
      %v198 = vsel %vm196, %v183, %v193
      %v199 = vld [vmem:[%s1] sm:$0xff]
      %v200 = vld [vmem:[%s1 + $0x8] sm:$0xff]
      %v201 = vld [vmem:[%s1 + $0x10] sm:$0xff]
      %v202 = vld [vmem:[%s1 + $0x18] sm:$0xff]
      %v203 = vld [vmem:[%s1 + $0x20] sm:$0xff]
      %v204 = vld [vmem:[%s1 + $0x28] sm:$0xff]
      %v205 = vld [vmem:[%s1 + $0x30] sm:$0xff]
      %v206 = vld [vmem:[%s1 + $0x38] sm:$0xff]
      %v207 = vld [vmem:[%s1 + $0x40] sm:$0xff]
      %v208 = vld [vmem:[%s1 + $0x48] sm:$0xff]
      %v209 = vld [vmem:[%s1 + $0x50] sm:$0xff]
      %v210 = vld [vmem:[%s1 + $0x58] sm:$0xff]
      %v211 = vld [vmem:[%s1 + $0x60] sm:$0xff]
      %v212 = vld [vmem:[%s1 + $0x68] sm:$0xff]
      %v213 = vld [vmem:[%s1 + $0x70] sm:$0xff]
      %v214 = vld [vmem:[%s1 + $0x78] sm:$0xff]
      %v215 = vld [vmem:[%s1 + $0x80] sm:$0xff]
      %v216 = vld [vmem:[%s1 + $0x88] sm:$0xff]
      %v217 = vld [vmem:[%s1 + $0x90] sm:$0xff]
      %v218 = vld [vmem:[%s1 + $0x98] sm:$0xff]
      %v219 = vld [vmem:[%s1 + $0xa0] sm:$0xff]
      %v220 = vld [vmem:[%s1 + $0xa8] sm:$0xff]
      %v221 = vld [vmem:[%s1 + $0xb0] sm:$0xff]
      %v222 = vld [vmem:[%s1 + $0xb8] sm:$0xff]
      %v224 = vsel %vm196, %v186, 0
      %v227 = vsel %vm196, %v187, 0
      %229 = vmatpush.msra.mxu0 %v214
      %230 = vmatpush.msra.mxu0 %v213
      %231 = vmatpush.msra.mxu0 %v212
      %232 = vmatpush.msra.mxu0 %v211
      %233 = vmatpush.msra.mxu0 %v210
      %234 = vmatpush.msra.mxu0 %v209
      %235 = vmatpush.msra.mxu0 %v208
      %236 = vmatpush.msra.mxu0 %v207
      %237 = vmatpush.msra.mxu0 %v206
      %238 = vmatpush.msra.mxu0 %v205
      %239 = vmatpush.msra.mxu0 %v204
      %240 = vmatpush.msra.mxu0 %v203
      %241 = vmatpush.msra.mxu0 %v202
      %242 = vmatpush.msra.mxu0 %v201
      %243 = vmatpush.msra.mxu0 %v200
      %244 = vmatpush.msra.mxu0 %v199
      %245 = vmatmul.f32.gmra.mxu0 %v197
      %v246 = vpop.f32.mrf.mxu0
      %v247 = vadd.f32 0.0, %v246
      %248 = vmatmul.f32.gmra.mxu0 %v198
      %v249 = vpop.f32.mrf.mxu0
      %v250 = vadd.f32 0.0, %v249
      %251 = vdwg.mxu0
      %252 = vmatpush.msra.mxu0 0.0
      %253 = vmatpush.msra.mxu0 0.0
      %254 = vmatpush.msra.mxu0 0.0
      %255 = vmatpush.msra.mxu0 0.0
      %256 = vmatpush.msra.mxu0 0.0
      %257 = vmatpush.msra.mxu0 0.0
      %258 = vmatpush.msra.mxu0 0.0
      %259 = vmatpush.msra.mxu0 0.0
      %260 = vmatpush.msra.mxu0 %v222
      %261 = vmatpush.msra.mxu0 %v221
      %262 = vmatpush.msra.mxu0 %v220
      %263 = vmatpush.msra.mxu0 %v219
      %264 = vmatpush.msra.mxu0 %v218
      %265 = vmatpush.msra.mxu0 %v217
      %266 = vmatpush.msra.mxu0 %v216
      %267 = vmatpush.msra.mxu0 %v215
      %268 = vmatmul.f32.gmra.mxu0 %v224
      %v269 = vpop.f32.mrf.mxu0
      %v270 = vadd.f32 %v247, %v269
      %271 = vmatmul.f32.gmra.mxu0 %v227
      %v272 = vpop.f32.mrf.mxu0
      %v273 = vadd.f32 %v250, %v272
      %274 = vdwg.mxu0
      %275 = vst [vmem:[%s177] sm:$0xff] %v270
      %276 = vst [vmem:[%s177 + $0x8] sm:$0xff] %v273
      %v277 = vadd.f32 %v270, %v273
      %v278 = vrot.slane %v277, 4
      %v279 = vadd.f32 %v277, %v278
      %v280 = vrot.slane %v279, 2
      %v281 = vadd.f32 %v279, %v280
      %v282 = vrot.slane %v281, 1
      %v283 = vadd.f32 %v281, %v282
      %284 = vst [vmem:[%s181] sm:$0x1] %v283
      %v285 = vmul.f32 %v270, %v270
      %v286 = vmul.f32 %v273, %v273
      %v287 = vadd.f32 %v285, %v286
      %v288 = vrot.slane %v287, 4
      %v289 = vadd.f32 %v287, %v288
      %v290 = vrot.slane %v289, 2
      %v291 = vadd.f32 %v289, %v290
      %v292 = vrot.slane %v291, 1
      %v293 = vadd.f32 %v291, %v292
      %294 = vst [vmem:[%s181 + $0x1] sm:$0x1] %v293
      %p295 = scmp.lt.s32.totalorder %s15, 1
      %s296 = scalar_select %p295, %s15, 1
      %s297 = smul.addr %s296, 2
      %s298 = smul.addr %s297, 8
      %s299 = scalar_lea.vmem %s2, %s298
      %p300 = scmp.lt.s32.totalorder %s15, 1
      %s301 = scalar_select %p300, %s15, 1
      %s302 = smul.addr %s301, 2
      %s303 = scalar_lea.vmem %s3, %s302
      // Predicated region
      $region29: #{dilconv_op.1} parent=27 // pred_check
        %p304 = pneg %p80
      $region30: #{dilconv_op.1} parent=27 // pred_check_branch
        %306 = sbr.rel (%p304) target = $region32
      $region31: #{dilconv_op.1} parent=27 // pred_region
        _
      $region32: #{dilconv_op.1} parent=27 // pred_fallthru
        _
      // Predicated region
      $region33: #{dilconv_op.1} parent=27 // pred_check
        %p307 = pneg %p106
      $region34: #{dilconv_op.1} parent=27 // pred_check_branch
        %309 = sbr.rel (%p307) target = $region36
      $region35: #{dilconv_op.1} parent=27 // pred_region
        _
      $region36: #{dilconv_op.1} parent=27 // pred_fallthru
        _
    $region28: #{dilconv_op.1} parent=5 // pred_fallthru
      _
    %p310 = scmp.le.s32.totalorder 2, %s10
    // Predicated region
    $region37: #{dilconv_op.1} parent=5 // pred_check
      %p311 = pneg %p310
    $region38: #{dilconv_op.1} parent=5 // pred_check_branch
      %313 = sbr.rel (%p311) target = $region40
    $region39: #{dilconv_op.1} parent=5 // pred_region
      %s314 = ssub.s32 %s10, 2
      // Predicated region
      $region41: #{dilconv_op.1} parent=39 // pred_check
        %p315 = pneg %p86
      $region42: #{dilconv_op.1} parent=39 // pred_check_branch
        %317 = sbr.rel (%p315) target = $region44
      $region43: #{dilconv_op.1} parent=39 // pred_region
        %p318 = scmp.lt.s32.totalorder %s16, 1
        %s319 = scalar_select %p318, %s16, 1
        %s320 = smul.addr %s319, 2
        %s321 = smul.addr %s320, 8
        %s322 = scalar_lea.vmem %s2, %s321
      $region44: #{dilconv_op.1} parent=39 // pred_fallthru
        _
      // Predicated region
      $region45: #{dilconv_op.1} parent=39 // pred_check
        %p323 = pneg %p112
      $region46: #{dilconv_op.1} parent=39 // pred_check_branch
        %325 = sbr.rel (%p323) target = $region48
      $region47: #{dilconv_op.1} parent=39 // pred_region
        %p326 = scmp.lt.s32.totalorder %s16, 1
        %s327 = scalar_select %p326, %s16, 1
        %s328 = smul.addr %s327, 2
        %s329 = scalar_lea.vmem %s3, %s328
      $region48: #{dilconv_op.1} parent=39 // pred_fallthru
        _
    $region40: #{dilconv_op.1} parent=5 // pred_fallthru
      _
  $region6: #{dilconv_op.1} parent=0 // loop_footer
    %s14 = sadd.s32 1, %s10
  $region7: #{dilconv_op.1} parent=0 // loop_footer_branch
    %9 = sbr.rel target = $region3
  $region8: #{dilconv_op.1} parent=0 // loop_exit
    _

</llo_original>
